<compile_context>
chip_gen: v5e
topology: v5e:2x2
jax: 0.10.0
libtpu: 0.0.40
codegen_flags: <defaults>
</compile_context>

<pallas_src>
import functools
import math

import jax
import jax.numpy as jnp
from jax.experimental import pallas as pl
from jax.experimental.pallas import tpu as pltpu

HIDDEN = 64          # logical hidden width (as in the PyTorch module)
HIDDEN_PAD = 128     # lane-dense padded hidden width
OUT_PAD = 128        # lane-dense padded fc3 width (matmul only; store is narrow)


def _round_up(x, m):
    return ((x + m - 1) // m) * m


def qnetwork_kernel(x_ref, w1_ref, b1_ref, w2_ref, b2_ref, w3_ref, b3_ref, out_ref):
    # x tile: (tb, state_size) f32.  Weights bf16 (MXU operands), biases f32.
    # Accumulate in f32; bias-add / ReLU stay in f32 on the VPU.
    x = x_ref[...].astype(jnp.bfloat16)

    # fc1 + ReLU  -> (tb, HIDDEN_PAD); padded columns stay exactly 0.
    h1 = jnp.dot(x, w1_ref[...], preferred_element_type=jnp.float32) + b1_ref[...]
    h1 = jnp.maximum(h1, 0.0)

    # fc2 + ReLU  -> (tb, HIDDEN_PAD)
    h2 = jnp.dot(h1.astype(jnp.bfloat16), w2_ref[...],
                 preferred_element_type=jnp.float32) + b2_ref[...]
    h2 = jnp.maximum(h2, 0.0)

    # fc3 (no activation): lane-dense 128x128 matmul, then store only the
    # real action_size columns (narrow masked store, but 32x less HBM write).
    out = jnp.dot(h2.astype(jnp.bfloat16), w3_ref[...],
                  preferred_element_type=jnp.float32) + b3_ref[...]
    out_ref[...] = out[:, :out_ref.shape[1]].astype(out_ref.dtype)


@functools.partial(jax.jit, static_argnames=("action_size", "tile_b"))
def qnetwork_forward(state, params, *, action_size, tile_b=2048):
    """state: (B, state_size) f32.  params: padded/bf16 weights from init_params."""
    w1, b1 = params["w1"], params["b1"]
    w2, b2 = params["w2"], params["b2"]
    w3, b3 = params["w3"], params["b3"]

    B, state_size = state.shape

    # Pad the batch only to a multiple of 8 (sublane granularity).
    B_pad8 = _round_up(B, 8)
    if B_pad8 != B:
        state = jnp.pad(state, ((0, B_pad8 - B), (0, 0)))

    # Batch tile: as large as possible (per-step overhead bound kernel), but on
    # v7x keep >= 2 grid steps once the batch is big enough so both TensorCores
    # get work (no-op constraint on v5e/v6e).
    tb = min(tile_b, B_pad8)
    if B_pad8 >= 512:
        tb = min(tb, _round_up(pl.cdiv(B_pad8, 2), 256))
    # tb is always a multiple of 8 (all candidates are).

    grid = (pl.cdiv(B_pad8, tb),)   # ragged last block handled by Pallas

    out_padded = pl.pallas_call(
        qnetwork_kernel,
        out_shape=jax.ShapeDtypeStruct((B_pad8, action_size), jnp.float32),
        grid=grid,
        in_specs=[
            # Activations: tiled along batch.
            pl.BlockSpec((tb, state_size), lambda i: (i, 0)),
            # Weights/biases: constant index_map -> VMEM-resident across steps.
            pl.BlockSpec((state_size, HIDDEN_PAD), lambda i: (0, 0)),
            pl.BlockSpec((1, HIDDEN_PAD), lambda i: (0, 0)),
            pl.BlockSpec((HIDDEN_PAD, HIDDEN_PAD), lambda i: (0, 0)),
            pl.BlockSpec((1, HIDDEN_PAD), lambda i: (0, 0)),
            pl.BlockSpec((HIDDEN_PAD, OUT_PAD), lambda i: (0, 0)),
            pl.BlockSpec((1, OUT_PAD), lambda i: (0, 0)),
        ],
        out_specs=pl.BlockSpec((tb, action_size), lambda i: (i, 0)),
        compiler_params=pltpu.CompilerParams(
            dimension_semantics=("parallel",),
        ),
    )(state, w1, b1, w2, b2, w3, b3)

    if B_pad8 != B:
        out_padded = out_padded[:B]
    return out_padded


def init_params(key, state_size, action_size):
    """PyTorch nn.Linear-style init (uniform +-1/sqrt(fan_in)), stored padded.

    Returns (padded_params, raw_params):
      padded: bf16 weights (in, out) zero-padded to lane-dense shapes, f32 biases (1, out_pad)
      raw:    f32 unpadded weights/biases for the pure-JAX reference.
    """
    def linear(key, fan_in, fan_out, pad_in, pad_out):
        kw, kb = jax.random.split(key)
        bound = 1.0 / math.sqrt(fan_in)
        w = jax.random.uniform(kw, (fan_in, fan_out), jnp.float32, -bound, bound)
        b = jax.random.uniform(kb, (1, fan_out), jnp.float32, -bound, bound)
        w_p = jnp.zeros((pad_in, pad_out), jnp.float32).at[:fan_in, :fan_out].set(w)
        b_p = jnp.zeros((1, pad_out), jnp.float32).at[:, :fan_out].set(b)
        return w_p.astype(jnp.bfloat16), b_p, w, b

    k1, k2, k3 = jax.random.split(key, 3)
    w1p, b1p, w1, b1 = linear(k1, state_size, HIDDEN, state_size, HIDDEN_PAD)
    w2p, b2p, w2, b2 = linear(k2, HIDDEN, HIDDEN, HIDDEN_PAD, HIDDEN_PAD)
    w3p, b3p, w3, b3 = linear(k3, HIDDEN, action_size, HIDDEN_PAD, OUT_PAD)

    padded = {"w1": w1p, "b1": b1p, "w2": w2p, "b2": b2p, "w3": w3p, "b3": b3p}
    raw = {"w1": w1, "b1": b1, "w2": w2, "b2": b2, "w3": w3, "b3": b3}
    return padded, raw


def _reference(state, raw):
    """Pure-JAX f32 reference (same math as the PyTorch forward)."""
    h1 = jnp.maximum(state @ raw["w1"] + raw["b1"], 0.0)
    h2 = jnp.maximum(h1 @ raw["w2"] + raw["b2"], 0.0)
    return h2 @ raw["w3"] + raw["b3"]


if __name__ == "__main__":
    # LunarLander-like sizes: state_size=8, action_size=4.
    state_size, action_size = 8, 4

    key = jax.random.PRNGKey(0)
    pkey, xkey1, xkey2 = jax.random.split(key, 3)
    params, raw = init_params(pkey, state_size, action_size)

    # Small batch (single tile, no padding).
    state_small = jax.random.normal(xkey1, (8, state_size), jnp.float32)
    out_small = qnetwork_forward(state_small, params, action_size=action_size)
    jax.block_until_ready(out_small)
    ref_small = _reference(state_small, raw)
    assert out_small.shape == (8, action_size)
    assert jnp.allclose(out_small, ref_small, atol=5e-2, rtol=5e-2)

    # Larger, non-multiple batch: exercises 8-row padding, the v7x 2-step
    # tile cap, and a ragged last grid block.
    state_big = jax.random.normal(xkey2, (600, state_size), jnp.float32)
    out_big = qnetwork_forward(state_big, params, action_size=action_size)
    jax.block_until_ready(out_big)
    ref_big = _reference(state_big, raw)
    assert out_big.shape == (600, action_size)
    assert jnp.allclose(out_big, ref_big, atol=5e-2, rtol=5e-2)

    print("KERNEL_OK")
</pallas_src>

<mosaic_0001>
module attributes {stable_mosaic.version = 11 : i64} {
  func.func @qnetwork_kernel(%arg0: i32, %arg1: memref<8x8xf32, #tpu.memory_space<vmem>>, %arg2: memref<8x128xbf16, #tpu.memory_space<vmem>>, %arg3: memref<1x128xf32, #tpu.memory_space<vmem>>, %arg4: memref<128x128xbf16, #tpu.memory_space<vmem>>, %arg5: memref<1x128xf32, #tpu.memory_space<vmem>>, %arg6: memref<128x128xbf16, #tpu.memory_space<vmem>>, %arg7: memref<1x128xf32, #tpu.memory_space<vmem>>, %arg8: memref<8x4xf32, #tpu.memory_space<vmem>>) attributes {dimension_semantics = [#tpu.dimension_semantics<parallel>], iteration_bounds = array<i64: 1>, scalar_prefetch = 0 : i64, scratch_operands = 0 : i64, tpu.core_type = #tpu.core_type<tc>, window_params = [{transform_indices = @transform_0, window_bounds = array<i64: 8, 8>}, {pipeline_mode = #tpu.pipeline_mode<synchronous>, transform_indices = @transform_1, window_bounds = array<i64: 8, 128>}, {pipeline_mode = #tpu.pipeline_mode<synchronous>, transform_indices = @transform_2, window_bounds = array<i64: 1, 128>}, {pipeline_mode = #tpu.pipeline_mode<synchronous>, transform_indices = @transform_3, window_bounds = array<i64: 128, 128>}, {pipeline_mode = #tpu.pipeline_mode<synchronous>, transform_indices = @transform_4, window_bounds = array<i64: 1, 128>}, {pipeline_mode = #tpu.pipeline_mode<synchronous>, transform_indices = @transform_5, window_bounds = array<i64: 128, 128>}, {pipeline_mode = #tpu.pipeline_mode<synchronous>, transform_indices = @transform_6, window_bounds = array<i64: 1, 128>}, {transform_indices = @transform_7, window_bounds = array<i64: 8, 4>}]} {
    %c0 = arith.constant 0 : index
    %c0_0 = arith.constant 0 : index
    %0 = vector.load %arg1[%c0, %c0_0] : memref<8x8xf32, #tpu.memory_space<vmem>>, vector<8x8xf32>
    %1 = arith.truncf %0 : vector<8x8xf32> to vector<8x8xbf16>
    %c0_1 = arith.constant 0 : index
    %c0_2 = arith.constant 0 : index
    %2 = vector.load %arg2[%c0_1, %c0_2] : memref<8x128xbf16, #tpu.memory_space<vmem>>, vector<8x128xbf16>
    %cst = arith.constant dense<0.000000e+00> : vector<8x128xf32>
    %3 = tpu.matmul %1, %2, %cst {dimension_numbers = #tpu.dot_dimension_numbers<[1], [0], [0], [1], [0, 0, 1, 1], [], []>} : vector<8x8xbf16>, vector<8x128xbf16>, vector<8x128xf32> -> vector<8x128xf32>
    %c0_3 = arith.constant 0 : index
    %c0_4 = arith.constant 0 : index
    %4 = vector.load %arg3[%c0_3, %c0_4] : memref<1x128xf32, #tpu.memory_space<vmem>>, vector<1x128xf32>
    %5 = vector.broadcast %4 : vector<1x128xf32> to vector<8x128xf32>
    %6 = arith.addf %3, %5 : vector<8x128xf32>
    %cst_5 = arith.constant 0.000000e+00 : f32
    %7 = vector.broadcast %cst_5 : f32 to vector<8x128xf32>
    %8 = arith.maximumf %6, %7 : vector<8x128xf32>
    %9 = arith.truncf %8 : vector<8x128xf32> to vector<8x128xbf16>
    %c0_6 = arith.constant 0 : index
    %c0_7 = arith.constant 0 : index
    %10 = vector.load %arg4[%c0_6, %c0_7] : memref<128x128xbf16, #tpu.memory_space<vmem>>, vector<128x128xbf16>
    %cst_8 = arith.constant dense<0.000000e+00> : vector<8x128xf32>
    %11 = tpu.matmul %9, %10, %cst_8 {dimension_numbers = #tpu.dot_dimension_numbers<[1], [0], [0], [1], [0, 0, 1, 1], [], []>} : vector<8x128xbf16>, vector<128x128xbf16>, vector<8x128xf32> -> vector<8x128xf32>
    %c0_9 = arith.constant 0 : index
    %c0_10 = arith.constant 0 : index
    %12 = vector.load %arg5[%c0_9, %c0_10] : memref<1x128xf32, #tpu.memory_space<vmem>>, vector<1x128xf32>
    %13 = vector.broadcast %12 : vector<1x128xf32> to vector<8x128xf32>
    %14 = arith.addf %11, %13 : vector<8x128xf32>
    %cst_11 = arith.constant 0.000000e+00 : f32
    %15 = vector.broadcast %cst_11 : f32 to vector<8x128xf32>
    %16 = arith.maximumf %14, %15 : vector<8x128xf32>
    %17 = arith.truncf %16 : vector<8x128xf32> to vector<8x128xbf16>
    %c0_12 = arith.constant 0 : index
    %c0_13 = arith.constant 0 : index
    %18 = vector.load %arg6[%c0_12, %c0_13] : memref<128x128xbf16, #tpu.memory_space<vmem>>, vector<128x128xbf16>
    %cst_14 = arith.constant dense<0.000000e+00> : vector<8x128xf32>
    %19 = tpu.matmul %17, %18, %cst_14 {dimension_numbers = #tpu.dot_dimension_numbers<[1], [0], [0], [1], [0, 0, 1, 1], [], []>} : vector<8x128xbf16>, vector<128x128xbf16>, vector<8x128xf32> -> vector<8x128xf32>
    %c0_15 = arith.constant 0 : index
    %c0_16 = arith.constant 0 : index
    %20 = vector.load %arg7[%c0_15, %c0_16] : memref<1x128xf32, #tpu.memory_space<vmem>>, vector<1x128xf32>
    %21 = vector.broadcast %20 : vector<1x128xf32> to vector<8x128xf32>
    %22 = arith.addf %19, %21 : vector<8x128xf32>
    %23 = vector.extract_strided_slice %22 {offsets = [0, 0], sizes = [8, 4], strides = [1, 1]} : vector<8x128xf32> to vector<8x4xf32>
    %c0_17 = arith.constant 0 : index
    %c0_18 = arith.constant 0 : index
    %24 = vector.load %arg8[%c0_17, %c0_18] : memref<8x4xf32, #tpu.memory_space<vmem>>, vector<8x4xf32>
    tpu.vector_store %arg8[%c0_17, %c0_18], %23 {strides = array<i32>} : memref<8x4xf32, #tpu.memory_space<vmem>>, vector<8x4xf32>,
    return
  }
  func.func @transform_0(%arg0: i32) -> (i32, i32) {
    %c0_i32 = arith.constant 0 : i32
    %c0_i32_0 = arith.constant 0 : i32
    return %arg0, %c0_i32 : i32, i32
  }
  func.func @transform_1(%arg0: i32) -> (i32, i32) {
    %c0_i32 = arith.constant 0 : i32
    %c0_i32_0 = arith.constant 0 : i32
    %c0_i32_1 = arith.constant 0 : i32
    return %c0_i32, %c0_i32_0 : i32, i32
  }
  func.func @transform_2(%arg0: i32) -> (i32, i32) {
    %c0_i32 = arith.constant 0 : i32
    %c0_i32_0 = arith.constant 0 : i32
    %c0_i32_1 = arith.constant 0 : i32
    return %c0_i32, %c0_i32_0 : i32, i32
  }
  func.func @transform_3(%arg0: i32) -> (i32, i32) {
    %c0_i32 = arith.constant 0 : i32
    %c0_i32_0 = arith.constant 0 : i32
    %c0_i32_1 = arith.constant 0 : i32
    return %c0_i32, %c0_i32_0 : i32, i32
  }
  func.func @transform_4(%arg0: i32) -> (i32, i32) {
    %c0_i32 = arith.constant 0 : i32
    %c0_i32_0 = arith.constant 0 : i32
    %c0_i32_1 = arith.constant 0 : i32
    return %c0_i32, %c0_i32_0 : i32, i32
  }
  func.func @transform_5(%arg0: i32) -> (i32, i32) {
    %c0_i32 = arith.constant 0 : i32
    %c0_i32_0 = arith.constant 0 : i32
    %c0_i32_1 = arith.constant 0 : i32
    return %c0_i32, %c0_i32_0 : i32, i32
  }
  func.func @transform_6(%arg0: i32) -> (i32, i32) {
    %c0_i32 = arith.constant 0 : i32
    %c0_i32_0 = arith.constant 0 : i32
    %c0_i32_1 = arith.constant 0 : i32
    return %c0_i32, %c0_i32_0 : i32, i32
  }
  func.func @transform_7(%arg0: i32) -> (i32, i32) {
    %c0_i32 = arith.constant 0 : i32
    %c0_i32_0 = arith.constant 0 : i32
    return %arg0, %c0_i32 : i32, i32
  }
}

</mosaic_0001>

<llo_original>
// kernel: qnetwork_forward.1
$region0: #{qnetwork_forward.1}
  #allocation0 [shape = 'u32[]', space=smem, size = 0x4, offset = 0x4, fixed_abs, tag = 'smem constant byte address 0x4 - core index']
  #allocation1 [shape = 'u32[72,128]{1,0:T(1,128)}', space=vmem, size = 0x9000, scoped, tag = 'internal scratch']
  %s0 = inlined_call_operand.hbm [shape: f32[8,8], index: 0, kind: input, shape index: {}]
  %s1 = inlined_call_operand.hbm [shape: bf16[8,128], index: 1, kind: input, shape index: {}]
  %s2 = inlined_call_operand.hbm [shape: f32[1,128], index: 2, kind: input, shape index: {}]
  %s3 = inlined_call_operand.hbm [shape: bf16[128,128], index: 3, kind: input, shape index: {}]
  %s4 = inlined_call_operand.vmem [shape: f32[1,128], index: 4, kind: input, shape index: {}]
  %s5 = inlined_call_operand.hbm [shape: bf16[128,128], index: 5, kind: input, shape index: {}]
  %s6 = inlined_call_operand.vmem [shape: f32[1,128], index: 6, kind: input, shape index: {}]
  %s7 = inlined_call_operand.vmem [shape: f32[8,4], index: 7, kind: output, shape index: {}]
  %s8 = sld [smem:[#allocation0]]
  $region58: #{qnetwork_forward.1} parent=0
    _
  %s10 = ssub.s32 1, %s8
  %s11 = scalar_select 0, %s10, %s8
  $region1: #{qnetwork_forward.1} parent=0
    #allocation2 [shape = 'u8[4096]{0}', space=vmem, size = 0x1000, scoped, tag = 'input window, operand 0, single buffered']
    #allocation3 [shape = 's32[1]{0}', space=sflag, size = 0x4, scoped, tag = 'scoped memory for qnetwork_forward.1']
    #allocation4 [shape = 'u8[2048]{0}', space=vmem, size = 0x800, scoped, tag = 'input window, operand 1, single buffered']
    #allocation5 [shape = 's32[1]{0}', space=sflag, size = 0x4, scoped, tag = 'scoped memory for qnetwork_forward.1']
    #allocation6 [shape = 'u8[512]{0}', space=vmem, size = 0x400, scoped, tag = 'input window, operand 2, single buffered']
    #allocation7 [shape = 'u8[32768]{0}', space=vmem, size = 0x8000, scoped, tag = 'input window, operand 3, single buffered']
    #allocation8 [shape = 's32[1]{0}', space=sflag, size = 0x4, scoped, tag = 'scoped memory for qnetwork_forward.1']
    #allocation9 [shape = 'u8[32768]{0}', space=vmem, size = 0x8000, scoped, tag = 'input window, operand 5, single buffered']
    %12 = vsyncpa [#allocation3], 0
    %13 = vsyncpa [#allocation5], 0
    %14 = vsyncpa [#allocation8], 0
    // Predicated region
    $region2: #{qnetwork_forward.1} parent=1 // pred_check
      _
    $region3: #{qnetwork_forward.1} parent=1 // pred_check_branch
      %16 = sbr.rel (0) target = $region5
    $region4: #{qnetwork_forward.1} parent=1 // pred_region
      %18 = vsyncadd [#allocation3], 0
      %s20 = sshll.u32 %s0, 4
      %s21 = int_to_ptr.hbm [resolvable:$true] %s20
      %s22 = sshll.u32 [#allocation2], 4
      %s23 = int_to_ptr.vmem [resolvable:$true] %s22
      %25 = dma.hbm_to_vmem [thread:$0]  %s21, 128, %s23, [#allocation3]
    $region5: #{qnetwork_forward.1} parent=1 // pred_fallthru
      _
    // Predicated region
    $region6: #{qnetwork_forward.1} parent=1 // pred_check
      _
    $region7: #{qnetwork_forward.1} parent=1 // pred_check_branch
      %27 = sbr.rel (0) target = $region9
    $region8: #{qnetwork_forward.1} parent=1 // pred_region
      %29 = vsyncadd [#allocation5], 0
      %s31 = sshll.u32 %s1, 4
      %s32 = int_to_ptr.hbm [resolvable:$true] %s31
      %s33 = sshll.u32 [#allocation4], 4
      %s34 = int_to_ptr.vmem [resolvable:$true] %s33
      %36 = dma.hbm_to_vmem [thread:$0]  %s32, 64, %s34, [#allocation5]
    $region9: #{qnetwork_forward.1} parent=1 // pred_fallthru
      _
    // Predicated region
    $region10: #{qnetwork_forward.1} parent=1 // pred_check
      _
    $region11: #{qnetwork_forward.1} parent=1 // pred_check_branch
      %38 = sbr.rel (0) target = $region13
    $region12: #{qnetwork_forward.1} parent=1 // pred_region
      %40 = vsyncadd [#allocation5], 0
      %s42 = sshll.u32 %s2, 4
      %s43 = int_to_ptr.hbm [resolvable:$true] %s42
      %s44 = sshll.u32 [#allocation6], 4
      %s45 = int_to_ptr.vmem [resolvable:$true] %s44
      %47 = dma.hbm_to_vmem [thread:$0]  %s43, 16, %s45, [#allocation5]
    $region13: #{qnetwork_forward.1} parent=1 // pred_fallthru
      _
    // Predicated region
    $region14: #{qnetwork_forward.1} parent=1 // pred_check
      _
    $region15: #{qnetwork_forward.1} parent=1 // pred_check_branch
      %49 = sbr.rel (0) target = $region17
    $region16: #{qnetwork_forward.1} parent=1 // pred_region
      %51 = vsyncadd [#allocation8], 0
      %s52 = sshll.u32 %s3, 4
      %s53 = int_to_ptr.hbm [resolvable:$true] %s52
      %s54 = sshll.u32 [#allocation7], 4
      %s55 = int_to_ptr.vmem [resolvable:$true] %s54
      %60 = dma.hbm_to_vmem [thread:$0]  %s53, 1024, %s55, [#allocation8], 64, 64, 4
    $region17: #{qnetwork_forward.1} parent=1 // pred_fallthru
      _
    // Predicated region
    $region18: #{qnetwork_forward.1} parent=1 // pred_check
      _
    $region19: #{qnetwork_forward.1} parent=1 // pred_check_branch
      %62 = sbr.rel (0) target = $region21
    $region20: #{qnetwork_forward.1} parent=1 // pred_region
      _
    $region21: #{qnetwork_forward.1} parent=1 // pred_fallthru
      _
    // Predicated region
    $region22: #{qnetwork_forward.1} parent=1 // pred_check
      _
    $region23: #{qnetwork_forward.1} parent=1 // pred_check_branch
      %64 = sbr.rel (0) target = $region25
    $region24: #{qnetwork_forward.1} parent=1 // pred_region
      %66 = vsyncadd [#allocation8], 0
      %s67 = sshll.u32 %s5, 4
      %s68 = int_to_ptr.hbm [resolvable:$true] %s67
      %s69 = sshll.u32 [#allocation9], 4
      %s70 = int_to_ptr.vmem [resolvable:$true] %s69
      %75 = dma.hbm_to_vmem [thread:$0]  %s68, 1024, %s70, [#allocation8], 64, 64, 4
    $region25: #{qnetwork_forward.1} parent=1 // pred_fallthru
      _
    // Predicated region
    $region26: #{qnetwork_forward.1} parent=1 // pred_check
      _
    $region27: #{qnetwork_forward.1} parent=1 // pred_check_branch
      %77 = sbr.rel (0) target = $region29
    $region28: #{qnetwork_forward.1} parent=1 // pred_region
      _
    $region29: #{qnetwork_forward.1} parent=1 // pred_fallthru
      _
    // Predicated region
    $region30: #{qnetwork_forward.1} parent=1 // pred_check
      _
    $region31: #{qnetwork_forward.1} parent=1 // pred_check_branch
      %79 = sbr.rel (0) target = $region33
    $region32: #{qnetwork_forward.1} parent=1 // pred_region
      %81 = dma.done [#allocation3], 128
    $region33: #{qnetwork_forward.1} parent=1 // pred_fallthru
      _
    // Predicated region
    $region34: #{qnetwork_forward.1} parent=1 // pred_check
      _
    $region35: #{qnetwork_forward.1} parent=1 // pred_check_branch
      %83 = sbr.rel (0) target = $region37
    $region36: #{qnetwork_forward.1} parent=1 // pred_region
      %85 = dma.done [#allocation5], 64
    $region37: #{qnetwork_forward.1} parent=1 // pred_fallthru
      _
    // Predicated region
    $region38: #{qnetwork_forward.1} parent=1 // pred_check
      _
    $region39: #{qnetwork_forward.1} parent=1 // pred_check_branch
      %87 = sbr.rel (0) target = $region41
    $region40: #{qnetwork_forward.1} parent=1 // pred_region
      %89 = dma.done [#allocation5], 16
    $region41: #{qnetwork_forward.1} parent=1 // pred_fallthru
      _
    // Predicated region
    $region42: #{qnetwork_forward.1} parent=1 // pred_check
      _
    $region43: #{qnetwork_forward.1} parent=1 // pred_check_branch
      %91 = sbr.rel (0) target = $region45
    $region44: #{qnetwork_forward.1} parent=1 // pred_region
      %93 = dma.done [#allocation8], 1024
    $region45: #{qnetwork_forward.1} parent=1 // pred_fallthru
      _
    // Predicated region
    $region46: #{qnetwork_forward.1} parent=1 // pred_check
      _
    $region47: #{qnetwork_forward.1} parent=1 // pred_check_branch
      %95 = sbr.rel (0) target = $region49
    $region48: #{qnetwork_forward.1} parent=1 // pred_region
      %97 = dma.done [#allocation8], 1024
    $region49: #{qnetwork_forward.1} parent=1 // pred_fallthru
      _
    %v99 = vld [vmem:[#allocation2] sm:$0xff]
    %v100 = vpack.c.bf16 %v99, %v99
    %v101 = vld [vmem:[#allocation4] sm:$0xf]
    %v102 = vld [vmem:[#allocation6] sm:$0x1]
    %v104 = vperm.slane %v102, 0
    %vm106 = vcmask 64512
    %v108 = vsel %vm106, %v100, 0
    %vm110 = vcmask 1043456
    %v112 = vsel %vm110, %v101, 0
    %114 = vmatpush.bf16.msra.mxu0 0
    %115 = vmatpush.bf16.msra.mxu0 0
    %116 = vmatpush.bf16.msra.mxu0 0
    %117 = vmatpush.bf16.msra.mxu0 0
    %118 = vmatpush.bf16.msra.mxu0 0
    %119 = vmatpush.bf16.msra.mxu0 0
    %120 = vmatpush.bf16.msra.mxu0 0
    %121 = vmatpush.bf16.msra.mxu0 %v112
    %122 = vmatmul.bf16.gmra.mxu0 %v108
    %v123 = vpop.f32.mrf.mxu0
    %v124 = vadd.f32 %v104, %v123
    %v125 = vpop.f32.mrf.mxu0
    %126 = vdwg.mxu0
    %v127 = vmax.f32 %v124, 0.0
    %v128 = vpack.c.bf16 %v127, %v127
    %v129 = vld [vmem:[#allocation7] sm:$0xf]
    %v130 = vld [vmem:[#allocation7 + $0x4] sm:$0xf]
    %v131 = vld [vmem:[#allocation7 + $0x8] sm:$0xf]
    %v132 = vld [vmem:[#allocation7 + $0xc] sm:$0xf]
    %v133 = vld [vmem:[#allocation7 + $0x10] sm:$0xf]
    %v134 = vld [vmem:[#allocation7 + $0x14] sm:$0xf]
    %v135 = vld [vmem:[#allocation7 + $0x18] sm:$0xf]
    %v136 = vld [vmem:[#allocation7 + $0x1c] sm:$0xf]
    %v137 = vld [vmem:[#allocation7 + $0x20] sm:$0xf]
    %v138 = vld [vmem:[#allocation7 + $0x24] sm:$0xf]
    %v139 = vld [vmem:[#allocation7 + $0x28] sm:$0xf]
    %v140 = vld [vmem:[#allocation7 + $0x2c] sm:$0xf]
    %v141 = vld [vmem:[#allocation7 + $0x30] sm:$0xf]
    %v142 = vld [vmem:[#allocation7 + $0x34] sm:$0xf]
    %v143 = vld [vmem:[#allocation7 + $0x38] sm:$0xf]
    %v144 = vld [vmem:[#allocation7 + $0x3c] sm:$0xf]
    %v145 = vld [vmem:[%s4] sm:$0x1]
    %v147 = vperm.slane %v145, 0
    %v165 = vunpack.c.l.b16 %v129
    %v166 = vunpack.c.l.b16 %v130
    %v167 = vunpack.c.l.b16 %v131
    %v168 = vunpack.c.l.b16 %v132
    %v169 = vunpack.c.l.b16 %v133
    %v170 = vunpack.c.l.b16 %v134
    %v171 = vunpack.c.l.b16 %v135
    %v172 = vunpack.c.l.b16 %v136
    %v173 = vunpack.c.l.b16 %v137
    %v174 = vunpack.c.l.b16 %v138
    %v175 = vunpack.c.l.b16 %v139
    %v176 = vunpack.c.l.b16 %v140
    %v177 = vunpack.c.l.b16 %v141
    %v178 = vunpack.c.l.b16 %v142
    %v179 = vunpack.c.l.b16 %v143
    %v180 = vunpack.c.l.b16 %v144
    %v181 = vpack.c.b16 %v166, %v165
    %v182 = vpack.c.b16 %v168, %v167
    %v183 = vpack.c.b16 %v170, %v169
    %v184 = vpack.c.b16 %v172, %v171
    %v185 = vpack.c.b16 %v174, %v173
    %v186 = vpack.c.b16 %v176, %v175
    %v187 = vpack.c.b16 %v178, %v177
    %v188 = vpack.c.b16 %v180, %v179
    %197 = vmatpush.bf16.msra.mxu0 %v188
    %198 = vmatpush.bf16.msra.mxu0 %v187
    %199 = vmatpush.bf16.msra.mxu0 %v186
    %200 = vmatpush.bf16.msra.mxu0 %v185
    %201 = vmatpush.bf16.msra.mxu0 %v184
    %202 = vmatpush.bf16.msra.mxu0 %v183
    %203 = vmatpush.bf16.msra.mxu0 %v182
    %204 = vmatpush.bf16.msra.mxu0 %v181
    %205 = vmatmul.bf16.gmra.mxu0 %v128
    %v206 = vpop.f32.mrf.mxu0
    %v207 = vadd.f32 %v147, %v206
    %v208 = vpop.f32.mrf.mxu0
    %209 = vdwg.mxu0
    %v210 = vmax.f32 %v207, 0.0
    %v211 = vpack.c.bf16 %v210, %v210
    %v212 = vld [vmem:[#allocation9] sm:$0xf]
    %v213 = vld [vmem:[#allocation9 + $0x4] sm:$0xf]
    %v214 = vld [vmem:[#allocation9 + $0x8] sm:$0xf]
    %v215 = vld [vmem:[#allocation9 + $0xc] sm:$0xf]
    %v216 = vld [vmem:[#allocation9 + $0x10] sm:$0xf]
    %v217 = vld [vmem:[#allocation9 + $0x14] sm:$0xf]
    %v218 = vld [vmem:[#allocation9 + $0x18] sm:$0xf]
    %v219 = vld [vmem:[#allocation9 + $0x1c] sm:$0xf]
    %v220 = vld [vmem:[#allocation9 + $0x20] sm:$0xf]
    %v221 = vld [vmem:[#allocation9 + $0x24] sm:$0xf]
    %v222 = vld [vmem:[#allocation9 + $0x28] sm:$0xf]
    %v223 = vld [vmem:[#allocation9 + $0x2c] sm:$0xf]
    %v224 = vld [vmem:[#allocation9 + $0x30] sm:$0xf]
    %v225 = vld [vmem:[#allocation9 + $0x34] sm:$0xf]
    %v226 = vld [vmem:[#allocation9 + $0x38] sm:$0xf]
    %v227 = vld [vmem:[#allocation9 + $0x3c] sm:$0xf]
    %v228 = vld [vmem:[%s6] sm:$0x1]
    %v230 = vperm.slane %v228, 0
    %v248 = vunpack.c.l.b16 %v212
    %v249 = vunpack.c.l.b16 %v213
    %v250 = vunpack.c.l.b16 %v214
    %v251 = vunpack.c.l.b16 %v215
    %v252 = vunpack.c.l.b16 %v216
    %v253 = vunpack.c.l.b16 %v217
    %v254 = vunpack.c.l.b16 %v218
    %v255 = vunpack.c.l.b16 %v219
    %v256 = vunpack.c.l.b16 %v220
    %v257 = vunpack.c.l.b16 %v221
    %v258 = vunpack.c.l.b16 %v222
    %v259 = vunpack.c.l.b16 %v223
    %v260 = vunpack.c.l.b16 %v224
    %v261 = vunpack.c.l.b16 %v225
    %v262 = vunpack.c.l.b16 %v226
    %v263 = vunpack.c.l.b16 %v227
    %v264 = vpack.c.b16 %v249, %v248
    %v265 = vpack.c.b16 %v251, %v250
    %v266 = vpack.c.b16 %v253, %v252
    %v267 = vpack.c.b16 %v255, %v254
    %v268 = vpack.c.b16 %v257, %v256
    %v269 = vpack.c.b16 %v259, %v258
    %v270 = vpack.c.b16 %v261, %v260
    %v271 = vpack.c.b16 %v263, %v262
    %280 = vmatpush.bf16.msra.mxu0 %v271
    %281 = vmatpush.bf16.msra.mxu0 %v270
    %282 = vmatpush.bf16.msra.mxu0 %v269
    %283 = vmatpush.bf16.msra.mxu0 %v268
    %284 = vmatpush.bf16.msra.mxu0 %v267
    %285 = vmatpush.bf16.msra.mxu0 %v266
    %286 = vmatpush.bf16.msra.mxu0 %v265
    %287 = vmatpush.bf16.msra.mxu0 %v264
    %288 = vmatmul.bf16.gmra.mxu0 %v211
    %v289 = vpop.f32.mrf.mxu0
    %v290 = vadd.f32 %v230, %v289
    %v291 = vpop.f32.mrf.mxu0
    %292 = vdwg.mxu0
    %vm293 = vcmask 31744
    %294 = vst.msk [vmem:[%s7] sm:$0xff] %vm293, %v290
    // Predicated region
    $region50: #{qnetwork_forward.1} parent=1 // pred_check
      _
    $region51: #{qnetwork_forward.1} parent=1 // pred_check_branch
      %296 = sbr.rel (0) target = $region53
    $region52: #{qnetwork_forward.1} parent=1 // pred_region
      _
    $region53: #{qnetwork_forward.1} parent=1 // pred_fallthru
      _
    // Predicated region
    $region54: #{qnetwork_forward.1} parent=1 // pred_check
      _
    $region55: #{qnetwork_forward.1} parent=1 // pred_check_branch
      %298 = sbr.rel (0) target = $region57
    $region56: #{qnetwork_forward.1} parent=1 // pred_region
      _
    $region57: #{qnetwork_forward.1} parent=1 // pred_fallthru
      _
    %299 = vsyncpa [#allocation3], 1
    %300 = vsyncpa [#allocation5], 1
    %301 = vsyncpa [#allocation8], 1

</llo_original>
